<compile_context>
chip_gen: v5e
topology: v5e:2x2
jax: 0.10.0
libtpu: 0.0.40
codegen_flags: <defaults>
</compile_context>

<pallas_src>
import jax
import jax.numpy as jnp
from jax.experimental import pallas as pl
from jax.experimental.pallas import tpu as pltpu


NUM_CLASSES = 15
IN_DIM = 43
H1 = 128
H2 = 64

# Rows per grid step.  At TB=8192 the per-step VMEM footprint (f32 x double
# buffer 8 MiB + f32 out double buffer 8 MiB + lane-padded f32/bf16 temps
# ~18 MiB) is ~34 MiB -> inside the explicit 48 MiB scoped-VMEM limit below and
# under every generation's physical VMEM (v5e/v6e 128 MiB, v7x 64 MiB per TC).
TB = 8192
# Once B exceeds this, force >=2 grid steps so both v7x TensorCores get work.
SPLIT_THRESHOLD = 2048
VMEM_LIMIT_BYTES = 48 * 1024 * 1024


def _mlp_kernel(x_ref, w1_ref, b1_ref, w2_ref, b2_ref, w3_ref, b3_ref, o_ref):
    # Fused 3-layer MLP on one batch tile:
    #   relu(x@W1+b1) -> relu(.@W2+b2) -> .@W3+b3
    # x streams in as f32 (no extra wrapper HBM pass); the bf16 cast happens in
    # VMEM right before the MXU (VPU slot has slack, cast is effectively free).
    x = x_ref[...].astype(jnp.bfloat16)

    h1 = jnp.dot(x, w1_ref[...], preferred_element_type=jnp.float32)
    h1 = jnp.maximum(h1 + b1_ref[...], 0.0).astype(jnp.bfloat16)   # b1 is [1, H1]

    h2 = jnp.dot(h1, w2_ref[...], preferred_element_type=jnp.float32)
    h2 = jnp.maximum(h2 + b2_ref[...], 0.0).astype(jnp.bfloat16)

    out = jnp.dot(h2, w3_ref[...], preferred_element_type=jnp.float32)
    # NUM_CLASSES=15 < 128 -> masked partial stores; only 60 B/row so accepted.
    o_ref[...] = (out + b3_ref[...]).astype(o_ref.dtype)


def _round_up(n, m):
    return ((n + m - 1) // m) * m


def _choose_tile(batch):
    tb = min(TB, _round_up(batch, 8))
    if SPLIT_THRESHOLD < batch <= TB:
        # Big batch that would otherwise be a single grid step: split in two so
        # the "parallel" grid axis can be sharded across v7x's two TensorCores.
        tb = _round_up((batch + 1) // 2, 8)
    return tb


def gesture_classifier_forward(x, params):
    """x: [B, 43] float32; params: dict of w1,b1,w2,b2,w3,b3 ([in,out] weights)."""
    B = x.shape[0]
    tb = _choose_tile(B)
    # Partial last block (B % tb != 0) is handled by Pallas with padded reads /
    # masked writes -> no jnp.pad HBM pass over x.
    grid = (pl.cdiv(B, tb),)

    # Weights go bf16 once (tiny, VMEM-resident across the grid); biases stay
    # f32 for the VPU bias-add.
    w1 = params["w1"].astype(jnp.bfloat16)
    w2 = params["w2"].astype(jnp.bfloat16)
    w3 = params["w3"].astype(jnp.bfloat16)
    b1 = params["b1"].reshape(1, -1).astype(jnp.float32)
    b2 = params["b2"].reshape(1, -1).astype(jnp.float32)
    b3 = params["b3"].reshape(1, -1).astype(jnp.float32)

    # Same block every iteration -> stays resident in VMEM (no re-DMA).
    resident = lambda a: pl.BlockSpec(a.shape, lambda i: (0, 0))

    out = pl.pallas_call(
        _mlp_kernel,
        out_shape=jax.ShapeDtypeStruct((B, NUM_CLASSES), jnp.float32),
        grid=grid,
        in_specs=[
            # x is the only streamed input; default double buffering suffices
            # (per-step x DMA < compute + writeback).
            pl.BlockSpec((tb, IN_DIM), lambda i: (i, 0)),
            resident(w1), resident(b1),
            resident(w2), resident(b2),
            resident(w3), resident(b3),
        ],
        out_specs=pl.BlockSpec((tb, NUM_CLASSES), lambda i: (i, 0)),
        compiler_params=pltpu.CompilerParams(
            dimension_semantics=("parallel",),      # megacore sharding on v7x
            vmem_limit_bytes=VMEM_LIMIT_BYTES),     # TB=8192 fits on v5e too
    )(x.astype(jnp.float32), w1, b1, w2, b2, w3, b3)

    return out


def init_params(key):
    """Deterministic init mimicking PyTorch nn.Linear default (U(-k, k), k=1/sqrt(fan_in))."""
    ks = jax.random.split(key, 6)

    def linear(kw, kb, fan_in, fan_out):
        bound = 1.0 / jnp.sqrt(jnp.float32(fan_in))
        w = jax.random.uniform(kw, (fan_in, fan_out), jnp.float32, -bound, bound)
        b = jax.random.uniform(kb, (fan_out,), jnp.float32, -bound, bound)
        return w, b

    w1, b1 = linear(ks[0], ks[1], IN_DIM, H1)
    w2, b2 = linear(ks[2], ks[3], H1, H2)
    w3, b3 = linear(ks[4], ks[5], H2, NUM_CLASSES)
    return {"w1": w1, "b1": b1, "w2": w2, "b2": b2, "w3": w3, "b3": b3}


def _reference_forward_f32(x, params):
    h1 = jnp.maximum(x @ params["w1"] + params["b1"], 0.0)
    h2 = jnp.maximum(h1 @ params["w2"] + params["b2"], 0.0)
    return h2 @ params["w3"] + params["b3"]


def _reference_forward_bf16(x, params):
    """Reference with the same bf16-input / f32-accumulate semantics as the kernel."""
    xb = x.astype(jnp.bfloat16)
    w1 = params["w1"].astype(jnp.bfloat16)
    w2 = params["w2"].astype(jnp.bfloat16)
    w3 = params["w3"].astype(jnp.bfloat16)
    h1 = jnp.maximum(
        jnp.dot(xb, w1, preferred_element_type=jnp.float32) + params["b1"], 0.0)
    h2 = jnp.maximum(
        jnp.dot(h1.astype(jnp.bfloat16), w2,
                preferred_element_type=jnp.float32) + params["b2"], 0.0)
    return (jnp.dot(h2.astype(jnp.bfloat16), w3,
                    preferred_element_type=jnp.float32) + params["b3"])


if __name__ == "__main__":
    key = jax.random.PRNGKey(0)
    k_param, k_x, k_x2 = jax.random.split(key, 3)

    params = init_params(k_param)

    # Primary small-shape check (batch=8, features=43).
    batch = 8
    x = jax.random.normal(k_x, (batch, IN_DIM), jnp.float32)
    out = jax.block_until_ready(gesture_classifier_forward(x, params))
    assert out.shape == (batch, NUM_CLASSES)

    # Tight check vs a reference using identical bf16/f32 mixed precision.
    ref_bf16 = _reference_forward_bf16(x, params)
    assert jnp.allclose(out, ref_bf16, atol=2e-3, rtol=2e-3)

    # Looser sanity check vs the pure-f32 PyTorch-equivalent reference.
    ref_f32 = _reference_forward_f32(x, params)
    assert jnp.allclose(out, ref_f32, atol=5e-2, rtol=5e-2)

    # Secondary check exercising the multi-step "parallel" grid and the
    # partial-last-block (no-pad) path: B=5000 -> tb=2504, grid=2, last block
    # masked to 2496 valid rows.
    batch2 = 5000
    x2 = jax.random.normal(k_x2, (batch2, IN_DIM), jnp.float32)
    out2 = jax.block_until_ready(gesture_classifier_forward(x2, params))
    assert out2.shape == (batch2, NUM_CLASSES)
    ref2 = _reference_forward_bf16(x2, params)
    assert jnp.allclose(out2, ref2, atol=2e-3, rtol=2e-3)

    print("KERNEL_OK")
</pallas_src>

<mosaic_0001>
module attributes {stable_mosaic.version = 11 : i64} {
  func.func @_mlp_kernel(%arg0: i32, %arg1: memref<8x43xf32, #tpu.memory_space<vmem>>, %arg2: memref<43x128xbf16, #tpu.memory_space<vmem>>, %arg3: memref<1x128xf32, #tpu.memory_space<vmem>>, %arg4: memref<128x64xbf16, #tpu.memory_space<vmem>>, %arg5: memref<1x64xf32, #tpu.memory_space<vmem>>, %arg6: memref<64x15xbf16, #tpu.memory_space<vmem>>, %arg7: memref<1x15xf32, #tpu.memory_space<vmem>>, %arg8: memref<8x15xf32, #tpu.memory_space<vmem>>) attributes {dimension_semantics = [#tpu.dimension_semantics<parallel>], iteration_bounds = array<i64: 1>, scalar_prefetch = 0 : i64, scratch_operands = 0 : i64, tpu.core_type = #tpu.core_type<tc>, window_params = [{transform_indices = @transform_0, window_bounds = array<i64: 8, 43>}, {pipeline_mode = #tpu.pipeline_mode<synchronous>, transform_indices = @transform_1, window_bounds = array<i64: 43, 128>}, {pipeline_mode = #tpu.pipeline_mode<synchronous>, transform_indices = @transform_2, window_bounds = array<i64: 1, 128>}, {pipeline_mode = #tpu.pipeline_mode<synchronous>, transform_indices = @transform_3, window_bounds = array<i64: 128, 64>}, {pipeline_mode = #tpu.pipeline_mode<synchronous>, transform_indices = @transform_4, window_bounds = array<i64: 1, 64>}, {pipeline_mode = #tpu.pipeline_mode<synchronous>, transform_indices = @transform_5, window_bounds = array<i64: 64, 15>}, {pipeline_mode = #tpu.pipeline_mode<synchronous>, transform_indices = @transform_6, window_bounds = array<i64: 1, 15>}, {transform_indices = @transform_7, window_bounds = array<i64: 8, 15>}]} {
    %c0 = arith.constant 0 : index
    %c0_0 = arith.constant 0 : index
    %0 = vector.load %arg1[%c0, %c0_0] : memref<8x43xf32, #tpu.memory_space<vmem>>, vector<8x43xf32>
    %1 = arith.truncf %0 : vector<8x43xf32> to vector<8x43xbf16>
    %c0_1 = arith.constant 0 : index
    %c0_2 = arith.constant 0 : index
    %2 = vector.load %arg2[%c0_1, %c0_2] : memref<43x128xbf16, #tpu.memory_space<vmem>>, vector<43x128xbf16>
    %cst = arith.constant dense<0.000000e+00> : vector<8x128xf32>
    %3 = tpu.matmul %1, %2, %cst {dimension_numbers = #tpu.dot_dimension_numbers<[1], [0], [0], [1], [0, 0, 1, 1], [], []>} : vector<8x43xbf16>, vector<43x128xbf16>, vector<8x128xf32> -> vector<8x128xf32>
    %c0_3 = arith.constant 0 : index
    %c0_4 = arith.constant 0 : index
    %4 = vector.load %arg3[%c0_3, %c0_4] : memref<1x128xf32, #tpu.memory_space<vmem>>, vector<1x128xf32>
    %5 = vector.broadcast %4 : vector<1x128xf32> to vector<8x128xf32>
    %6 = arith.addf %3, %5 : vector<8x128xf32>
    %cst_5 = arith.constant 0.000000e+00 : f32
    %7 = vector.broadcast %cst_5 : f32 to vector<8x128xf32>
    %8 = arith.maximumf %6, %7 : vector<8x128xf32>
    %9 = arith.truncf %8 : vector<8x128xf32> to vector<8x128xbf16>
    %c0_6 = arith.constant 0 : index
    %c0_7 = arith.constant 0 : index
    %10 = vector.load %arg4[%c0_6, %c0_7] : memref<128x64xbf16, #tpu.memory_space<vmem>>, vector<128x64xbf16>
    %cst_8 = arith.constant dense<0.000000e+00> : vector<8x64xf32>
    %11 = tpu.matmul %9, %10, %cst_8 {dimension_numbers = #tpu.dot_dimension_numbers<[1], [0], [0], [1], [0, 0, 1, 1], [], []>} : vector<8x128xbf16>, vector<128x64xbf16>, vector<8x64xf32> -> vector<8x64xf32>
    %c0_9 = arith.constant 0 : index
    %c0_10 = arith.constant 0 : index
    %12 = vector.load %arg5[%c0_9, %c0_10] : memref<1x64xf32, #tpu.memory_space<vmem>>, vector<1x64xf32>
    %13 = vector.broadcast %12 : vector<1x64xf32> to vector<8x64xf32>
    %14 = arith.addf %11, %13 : vector<8x64xf32>
    %cst_11 = arith.constant 0.000000e+00 : f32
    %15 = vector.broadcast %cst_11 : f32 to vector<8x64xf32>
    %16 = arith.maximumf %14, %15 : vector<8x64xf32>
    %17 = arith.truncf %16 : vector<8x64xf32> to vector<8x64xbf16>
    %c0_12 = arith.constant 0 : index
    %c0_13 = arith.constant 0 : index
    %18 = vector.load %arg6[%c0_12, %c0_13] : memref<64x15xbf16, #tpu.memory_space<vmem>>, vector<64x15xbf16>
    %cst_14 = arith.constant dense<0.000000e+00> : vector<8x15xf32>
    %19 = tpu.matmul %17, %18, %cst_14 {dimension_numbers = #tpu.dot_dimension_numbers<[1], [0], [0], [1], [0, 0, 1, 1], [], []>} : vector<8x64xbf16>, vector<64x15xbf16>, vector<8x15xf32> -> vector<8x15xf32>
    %c0_15 = arith.constant 0 : index
    %c0_16 = arith.constant 0 : index
    %20 = vector.load %arg7[%c0_15, %c0_16] : memref<1x15xf32, #tpu.memory_space<vmem>>, vector<1x15xf32>
    %21 = vector.broadcast %20 : vector<1x15xf32> to vector<8x15xf32>
    %22 = arith.addf %19, %21 : vector<8x15xf32>
    %c0_17 = arith.constant 0 : index
    %c0_18 = arith.constant 0 : index
    %23 = vector.load %arg8[%c0_17, %c0_18] : memref<8x15xf32, #tpu.memory_space<vmem>>, vector<8x15xf32>
    tpu.vector_store %arg8[%c0_17, %c0_18], %22 {strides = array<i32>} : memref<8x15xf32, #tpu.memory_space<vmem>>, vector<8x15xf32>,
    return
  }
  func.func @transform_0(%arg0: i32) -> (i32, i32) {
    %c0_i32 = arith.constant 0 : i32
    %c0_i32_0 = arith.constant 0 : i32
    return %arg0, %c0_i32 : i32, i32
  }
  func.func @transform_1(%arg0: i32) -> (i32, i32) {
    %c0_i32 = arith.constant 0 : i32
    %c0_i32_0 = arith.constant 0 : i32
    %c0_i32_1 = arith.constant 0 : i32
    return %c0_i32, %c0_i32_0 : i32, i32
  }
  func.func @transform_2(%arg0: i32) -> (i32, i32) {
    %c0_i32 = arith.constant 0 : i32
    %c0_i32_0 = arith.constant 0 : i32
    %c0_i32_1 = arith.constant 0 : i32
    return %c0_i32, %c0_i32_0 : i32, i32
  }
  func.func @transform_3(%arg0: i32) -> (i32, i32) {
    %c0_i32 = arith.constant 0 : i32
    %c0_i32_0 = arith.constant 0 : i32
    %c0_i32_1 = arith.constant 0 : i32
    return %c0_i32, %c0_i32_0 : i32, i32
  }
  func.func @transform_4(%arg0: i32) -> (i32, i32) {
    %c0_i32 = arith.constant 0 : i32
    %c0_i32_0 = arith.constant 0 : i32
    %c0_i32_1 = arith.constant 0 : i32
    return %c0_i32, %c0_i32_0 : i32, i32
  }
  func.func @transform_5(%arg0: i32) -> (i32, i32) {
    %c0_i32 = arith.constant 0 : i32
    %c0_i32_0 = arith.constant 0 : i32
    %c0_i32_1 = arith.constant 0 : i32
    return %c0_i32, %c0_i32_0 : i32, i32
  }
  func.func @transform_6(%arg0: i32) -> (i32, i32) {
    %c0_i32 = arith.constant 0 : i32
    %c0_i32_0 = arith.constant 0 : i32
    %c0_i32_1 = arith.constant 0 : i32
    return %c0_i32, %c0_i32_0 : i32, i32
  }
  func.func @transform_7(%arg0: i32) -> (i32, i32) {
    %c0_i32 = arith.constant 0 : i32
    %c0_i32_0 = arith.constant 0 : i32
    return %arg0, %c0_i32 : i32, i32
  }
}

</mosaic_0001>

<llo_original>
// kernel: tpu_custom_call.1
$region0: #{tpu_custom_call.1}
  #allocation0 [shape = 'u32[]', space=smem, size = 0x4, offset = 0x4, fixed_abs, tag = 'smem constant byte address 0x4 - core index']
  #allocation1 [shape = 'u32[72,128]{1,0:T(1,128)}', space=vmem, size = 0x9000, scoped, tag = 'internal scratch']
  %s0 = inlined_call_operand.vmem [shape: f32[8,43], index: 0, kind: input, shape index: {}]
  %s1 = inlined_call_operand.vmem [shape: bf16[43,128], index: 1, kind: input, shape index: {}]
  %s2 = inlined_call_operand.vmem [shape: f32[1,128], index: 2, kind: input, shape index: {}]
  %s3 = inlined_call_operand.vmem [shape: bf16[128,64], index: 3, kind: input, shape index: {}]
  %s4 = inlined_call_operand.vmem [shape: f32[1,64], index: 4, kind: input, shape index: {}]
  %s5 = inlined_call_operand.vmem [shape: bf16[64,15], index: 5, kind: input, shape index: {}]
  %s6 = inlined_call_operand.vmem [shape: f32[1,15], index: 6, kind: input, shape index: {}]
  %s7 = inlined_call_operand.hbm [shape: f32[8,15], index: 7, kind: output, shape index: {}]
  %s8 = sld [smem:[#allocation0]]
  $region38: #{tpu_custom_call.1} parent=0
    _
  %s10 = ssub.s32 1, %s8
  %s11 = scalar_select 0, %s10, %s8
  $region1: #{tpu_custom_call.1} parent=0
    #allocation2 [shape = 'u8[4096]{0}', space=vmem, size = 0x1000, scoped, tag = 'output window, operand 0, single buffered']
    #allocation3 [shape = 's32[1]{0}', space=sflag, size = 0x4, scoped, tag = 'scoped memory for tpu_custom_call.1']
    %12 = vsyncpa [#allocation3], 0
    // Predicated region
    $region2: #{tpu_custom_call.1} parent=1 // pred_check
      _
    $region3: #{tpu_custom_call.1} parent=1 // pred_check_branch
      %14 = sbr.rel (0) target = $region5
    $region4: #{tpu_custom_call.1} parent=1 // pred_region
      _
    $region5: #{tpu_custom_call.1} parent=1 // pred_fallthru
      _
    // Predicated region
    $region6: #{tpu_custom_call.1} parent=1 // pred_check
      _
    $region7: #{tpu_custom_call.1} parent=1 // pred_check_branch
      %16 = sbr.rel (0) target = $region9
    $region8: #{tpu_custom_call.1} parent=1 // pred_region
      _
    $region9: #{tpu_custom_call.1} parent=1 // pred_fallthru
      _
    // Predicated region
    $region10: #{tpu_custom_call.1} parent=1 // pred_check
      _
    $region11: #{tpu_custom_call.1} parent=1 // pred_check_branch
      %18 = sbr.rel (0) target = $region13
    $region12: #{tpu_custom_call.1} parent=1 // pred_region
      _
    $region13: #{tpu_custom_call.1} parent=1 // pred_fallthru
      _
    // Predicated region
    $region14: #{tpu_custom_call.1} parent=1 // pred_check
      _
    $region15: #{tpu_custom_call.1} parent=1 // pred_check_branch
      %20 = sbr.rel (0) target = $region17
    $region16: #{tpu_custom_call.1} parent=1 // pred_region
      _
    $region17: #{tpu_custom_call.1} parent=1 // pred_fallthru
      _
    // Predicated region
    $region18: #{tpu_custom_call.1} parent=1 // pred_check
      _
    $region19: #{tpu_custom_call.1} parent=1 // pred_check_branch
      %22 = sbr.rel (0) target = $region21
    $region20: #{tpu_custom_call.1} parent=1 // pred_region
      _
    $region21: #{tpu_custom_call.1} parent=1 // pred_fallthru
      _
    // Predicated region
    $region22: #{tpu_custom_call.1} parent=1 // pred_check
      _
    $region23: #{tpu_custom_call.1} parent=1 // pred_check_branch
      %24 = sbr.rel (0) target = $region25
    $region24: #{tpu_custom_call.1} parent=1 // pred_region
      _
    $region25: #{tpu_custom_call.1} parent=1 // pred_fallthru
      _
    // Predicated region
    $region26: #{tpu_custom_call.1} parent=1 // pred_check
      _
    $region27: #{tpu_custom_call.1} parent=1 // pred_check_branch
      %26 = sbr.rel (0) target = $region29
    $region28: #{tpu_custom_call.1} parent=1 // pred_region
      _
    $region29: #{tpu_custom_call.1} parent=1 // pred_fallthru
      _
    %v28 = vld [vmem:[%s0] sm:$0xff]
    %v29 = vpack.c.bf16 %v28, %v28
    %v30 = vld [vmem:[%s1] sm:$0xf]
    %v31 = vld [vmem:[%s1 + $0x4] sm:$0xf]
    %v32 = vld [vmem:[%s1 + $0x8] sm:$0xf]
    %v33 = vld [vmem:[%s1 + $0xc] sm:$0xf]
    %v34 = vld [vmem:[%s1 + $0x10] sm:$0xf]
    %v35 = vld [vmem:[%s1 + $0x14] sm:$0x3]
    %v36 = vld [vmem:[%s2] sm:$0x1]
    %v38 = vperm.slane %v36, 0
    %v46 = vunpack.c.l.b16 %v30
    %v47 = vunpack.c.l.b16 %v31
    %v48 = vunpack.c.l.b16 %v32
    %v49 = vunpack.c.l.b16 %v33
    %v50 = vunpack.c.l.b16 %v34
    %v51 = vunpack.c.l.b16 %v35
    %v52 = vpack.c.b16 %v47, %v46
    %v53 = vpack.c.b16 %v49, %v48
    %v54 = vpack.c.b16 %v51, %v50
    %vm57 = vcmask 351232
    %v59 = vsel %vm57, %v29, 0
    %vm61 = vcmask 1044480
    %vm62 = vcmask 1045504
    %v63 = vsel %vm61, 4294967295, 65535
    %v64 = vsel %vm62, %v63, 0
    %v66 = vand.u32 %v54, %v64
    %68 = vmatpush.bf16.msra.mxu0 0
    %69 = vmatpush.bf16.msra.mxu0 0
    %70 = vmatpush.bf16.msra.mxu0 0
    %71 = vmatpush.bf16.msra.mxu0 0
    %72 = vmatpush.bf16.msra.mxu0 0
    %73 = vmatpush.bf16.msra.mxu0 %v66
    %74 = vmatpush.bf16.msra.mxu0 %v53
    %75 = vmatpush.bf16.msra.mxu0 %v52
    %76 = vmatmul.bf16.gmra.mxu0 %v59
    %v77 = vpop.f32.mrf.mxu0
    %v78 = vadd.f32 %v38, %v77
    %v79 = vpop.f32.mrf.mxu0
    %80 = vdwg.mxu0
    %v81 = vmax.f32 %v78, 0.0
    %v82 = vpack.c.bf16 %v81, %v81
    %v83 = vld [vmem:[%s3] sm:$0xf]
    %v84 = vld [vmem:[%s3 + $0x4] sm:$0xf]
    %v85 = vld [vmem:[%s3 + $0x8] sm:$0xf]
    %v86 = vld [vmem:[%s3 + $0xc] sm:$0xf]
    %v87 = vld [vmem:[%s3 + $0x10] sm:$0xf]
    %v88 = vld [vmem:[%s3 + $0x14] sm:$0xf]
    %v89 = vld [vmem:[%s3 + $0x18] sm:$0xf]
    %v90 = vld [vmem:[%s3 + $0x1c] sm:$0xf]
    %v91 = vld [vmem:[%s3 + $0x20] sm:$0xf]
    %v92 = vld [vmem:[%s3 + $0x24] sm:$0xf]
    %v93 = vld [vmem:[%s3 + $0x28] sm:$0xf]
    %v94 = vld [vmem:[%s3 + $0x2c] sm:$0xf]
    %v95 = vld [vmem:[%s3 + $0x30] sm:$0xf]
    %v96 = vld [vmem:[%s3 + $0x34] sm:$0xf]
    %v97 = vld [vmem:[%s3 + $0x38] sm:$0xf]
    %v98 = vld [vmem:[%s3 + $0x3c] sm:$0xf]
    %v99 = vld [vmem:[%s4] sm:$0x1]
    %v101 = vperm.slane %v99, 0
    %v119 = vunpack.c.l.b16 %v83
    %v120 = vunpack.c.l.b16 %v84
    %v121 = vunpack.c.l.b16 %v85
    %v122 = vunpack.c.l.b16 %v86
    %v123 = vunpack.c.l.b16 %v87
    %v124 = vunpack.c.l.b16 %v88
    %v125 = vunpack.c.l.b16 %v89
    %v126 = vunpack.c.l.b16 %v90
    %v127 = vunpack.c.l.b16 %v91
    %v128 = vunpack.c.l.b16 %v92
    %v129 = vunpack.c.l.b16 %v93
    %v130 = vunpack.c.l.b16 %v94
    %v131 = vunpack.c.l.b16 %v95
    %v132 = vunpack.c.l.b16 %v96
    %v133 = vunpack.c.l.b16 %v97
    %v134 = vunpack.c.l.b16 %v98
    %v135 = vpack.c.b16 %v120, %v119
    %v136 = vpack.c.b16 %v122, %v121
    %v137 = vpack.c.b16 %v124, %v123
    %v138 = vpack.c.b16 %v126, %v125
    %v139 = vpack.c.b16 %v128, %v127
    %v140 = vpack.c.b16 %v130, %v129
    %v141 = vpack.c.b16 %v132, %v131
    %v142 = vpack.c.b16 %v134, %v133
    %151 = vmatpush.bf16.msra.mxu0 %v142
    %152 = vmatpush.bf16.msra.mxu0 %v141
    %153 = vmatpush.bf16.msra.mxu0 %v140
    %154 = vmatpush.bf16.msra.mxu0 %v139
    %155 = vmatpush.bf16.msra.mxu0 %v138
    %156 = vmatpush.bf16.msra.mxu0 %v137
    %157 = vmatpush.bf16.msra.mxu0 %v136
    %158 = vmatpush.bf16.msra.mxu0 %v135
    %159 = vmatmul.bf16.gmra.mxu0 %v82
    %v160 = vpop.f32.mrf.mxu0
    %v161 = vadd.f32 %v101, %v160
    %v162 = vpop.f32.mrf.mxu0
    %163 = vdwg.mxu0
    %v164 = vmax.f32 %v161, 0.0
    %v165 = vpack.c.bf16 %v164, %v164
    %v166 = vld [vmem:[%s5] sm:$0xf]
    %v167 = vld [vmem:[%s5 + $0x4] sm:$0xf]
    %v168 = vld [vmem:[%s5 + $0x8] sm:$0xf]
    %v169 = vld [vmem:[%s5 + $0xc] sm:$0xf]
    %v170 = vld [vmem:[%s5 + $0x10] sm:$0xf]
    %v171 = vld [vmem:[%s5 + $0x14] sm:$0xf]
    %v172 = vld [vmem:[%s5 + $0x18] sm:$0xf]
    %v173 = vld [vmem:[%s5 + $0x1c] sm:$0xf]
    %v174 = vld [vmem:[%s6] sm:$0x1]
    %v176 = vperm.slane %v174, 0
    %v186 = vunpack.c.l.b16 %v166
    %v187 = vunpack.c.l.b16 %v167
    %v188 = vunpack.c.l.b16 %v168
    %v189 = vunpack.c.l.b16 %v169
    %v190 = vunpack.c.l.b16 %v170
    %v191 = vunpack.c.l.b16 %v171
    %v192 = vunpack.c.l.b16 %v172
    %v193 = vunpack.c.l.b16 %v173
    %v194 = vpack.c.b16 %v187, %v186
    %v195 = vpack.c.b16 %v189, %v188
    %v196 = vpack.c.b16 %v191, %v190
    %v197 = vpack.c.b16 %v193, %v192
    %vm202 = vcmask 523264
    %v204 = vsel %vm202, %v165, 0
    %206 = vmatpush.bf16.msra.mxu0 0
    %207 = vmatpush.bf16.msra.mxu0 0
    %208 = vmatpush.bf16.msra.mxu0 0
    %209 = vmatpush.bf16.msra.mxu0 0
    %210 = vmatpush.bf16.msra.mxu0 %v197
    %211 = vmatpush.bf16.msra.mxu0 %v196
    %212 = vmatpush.bf16.msra.mxu0 %v195
    %213 = vmatpush.bf16.msra.mxu0 %v194
    %214 = vmatmul.bf16.gmra.mxu0 %v204
    %v215 = vpop.f32.mrf.mxu0
    %v216 = vadd.f32 %v176, %v215
    %v217 = vpop.f32.mrf.mxu0
    %218 = vdwg.mxu0
    %vm219 = vcmask 121856
    %220 = vst.msk [vmem:[#allocation2] sm:$0xff] %vm219, %v216
    // Predicated region
    $region30: #{tpu_custom_call.1} parent=1 // pred_check
      _
    $region31: #{tpu_custom_call.1} parent=1 // pred_check_branch
      %222 = sbr.rel (0) target = $region33
    $region32: #{tpu_custom_call.1} parent=1 // pred_region
      %224 = vsyncadd [#allocation3], 0
      %s226 = sshll.u32 [#allocation2], 4
      %s227 = int_to_ptr.vmem [resolvable:$true] %s226
      %s228 = sshll.u32 %s7, 4
      %s229 = int_to_ptr.hbm [resolvable:$true] %s228
      %231 = dma.vmem_to_hbm [thread:$0]  %s227, 128, %s229, [#allocation3]
    $region33: #{tpu_custom_call.1} parent=1 // pred_fallthru
      _
    // Predicated region
    $region34: #{tpu_custom_call.1} parent=1 // pred_check
      _
    $region35: #{tpu_custom_call.1} parent=1 // pred_check_branch
      %233 = sbr.rel (0) target = $region37
    $region36: #{tpu_custom_call.1} parent=1 // pred_region
      %235 = dma.done [#allocation3], 128
    $region37: #{tpu_custom_call.1} parent=1 // pred_fallthru
      _
    %236 = vsyncpa [#allocation3], 1

</llo_original>
